<compile_context>
chip_gen: v7x
topology: tpu7x:2x2x1
jax: 0.10.0
libtpu: 0.0.40
codegen_flags: <defaults>
</compile_context>

<pallas_src>
import functools
import math

import jax
import jax.numpy as jnp
from jax.experimental import pallas as pl
from jax.experimental.pallas import tpu as pltpu


def _round_up(n, m):
    return ((n + m - 1) // m) * m


_MAX_TILE_G = 32768  # lanes per block; big enough to amortize per-step overhead


def _choose_tile_g(bh, cap=_MAX_TILE_G):
    """Largest lane tile (multiple of 128) covering B*H, capped for VMEM."""
    bhp = _round_up(max(bh, 1), 128)
    if bhp <= cap:
        return bhp
    n_tiles = -(-bhp // cap)
    return _round_up(-(-bhp // n_tiles), 128)


def _vmem_limit_bytes(tile_g, K, Coutp, Cin):
    """Derive the scoped-VMEM request from padded block sizes (not a magic 32MiB)."""
    x_block = _round_up(max(Cin, 1), 16) * tile_g * 2      # bf16 (16,128) tiling
    out_block = _round_up(Coutp, 8) * tile_g * 4           # f32 (8,128) tiling
    est = 2 * K * x_block + 2 * out_block                  # double-buffered streams
    est += 2 * Coutp * tile_g * 4                          # y temporary
    est += _round_up(K * Cin, 16) * tile_g * 2             # repacked x temporary
    est += Coutp * tile_g * 4                              # gated temporary
    est += 1 << 20                                         # weights / bias / misc
    return int(min(max(2 * est, 16 * 1024 * 1024), 48 * 1024 * 1024))


def _tap_index_map(g, s, w, n, traj_ref, *, k, step):
    # Row gather: the node axis has block size 1, so the block index IS the
    # node id; taken straight from the scalar-prefetched trajectory table.
    return (traj_ref[s, n, w + k * step], 0, g)


def _pcn_kernel(traj_ref, *refs, K, Coutp, inv_ntraj):
    """refs = (x_tap_0..x_tap_{K-1}, w_ref, b_ref, o_ref).
    x tap ref: (Cin, tile_g) bf16 (node dim squeezed);
    w_ref: (2*Coutp, K*Cin) bf16; b_ref: (2*Coutp, 1) f32;
    o_ref: (Coutp, tile_g) f32, revisited/accumulated across the Ntraj axis."""
    del traj_ref  # only used by the index_maps
    x_refs = refs[:K]
    w_ref, b_ref, o_ref = refs[K], refs[K + 1], refs[K + 2]
    n = pl.program_id(3)

    # Repack the K dilated taps once per step along Cin: (K*Cin, tile_g).
    if K == 1:
        x_cat = x_refs[0][...]
    else:
        x_cat = jnp.concatenate([r[...] for r in x_refs], axis=0)

    # Fused conv1/conv2 over all K taps: one small MXU dot, f32 accumulation.
    y = jnp.dot(w_ref[...], x_cat, preferred_element_type=jnp.float32)
    y = y + b_ref[...]                        # (2*Coutp, tile_g)

    y1 = y[:Coutp, :]                         # conv1 rows (8-sublane aligned)
    y2 = y[Coutp:, :]                         # conv2 rows
    contrib = (y1 * jax.nn.sigmoid(y2)) * inv_ntraj   # fold mean over Ntraj

    @pl.when(n == 0)
    def _():
        o_ref[...] = contrib

    @pl.when(n > 0)
    def _():
        o_ref[...] += contrib


def pcn_traj_gated_conv(xt, traj_idx, wf, bf, *, K, step, W_out, Coutp, Ntraj,
                        tile_g):
    """xt: [N_nodes, Cin, Gp] bf16 (Gp multiple of tile_g); traj_idx: [S,Ntraj,T]
    int32; wf: [2*Coutp, K*Cin] bf16; bf: [2*Coutp, 1] f32.
    Returns [S, W_out, Coutp, Gp] f32 (mean over Ntraj of the gated conv)."""
    N_nodes, Cin, Gp = xt.shape
    S = traj_idx.shape[0]

    kernel = functools.partial(_pcn_kernel, K=K, Coutp=Coutp,
                               inv_ntraj=1.0 / float(Ntraj))
    x_specs = [
        pl.BlockSpec((None, Cin, tile_g),
                     functools.partial(_tap_index_map, k=k, step=step))
        for k in range(K)
    ]
    grid = (Gp // tile_g, S, W_out, Ntraj)

    return pl.pallas_call(
        kernel,
        out_shape=jax.ShapeDtypeStruct((S, W_out, Coutp, Gp), jnp.float32),
        grid_spec=pltpu.PrefetchScalarGridSpec(
            num_scalar_prefetch=1,
            grid=grid,
            in_specs=x_specs + [
                pl.BlockSpec((2 * Coutp, K * Cin), lambda g, s, w, n, tr: (0, 0)),
                pl.BlockSpec((2 * Coutp, 1), lambda g, s, w, n, tr: (0, 0)),
            ],
            out_specs=pl.BlockSpec((None, None, Coutp, tile_g),
                                   lambda g, s, w, n, tr: (s, w, 0, g)),
        ),
        compiler_params=pltpu.CompilerParams(
            dimension_semantics=("parallel", "parallel", "parallel", "arbitrary"),
            vmem_limit_bytes=_vmem_limit_bytes(tile_g, K, Coutp, Cin),
        ),
    )(traj_idx, *([xt] * K), wf, bf)


class PCNLayerPallas:
    """JAX/Pallas port of PCNLayer."""

    def __init__(self, in_channels, out_channels, kernel_size=2, step=2, key=None):
        self.in_channels = in_channels
        self.out_channels = out_channels
        self.kernel_size = kernel_size
        self.step = step
        if key is None:
            key = jax.random.PRNGKey(42)
        k1, k2, k3, k4 = jax.random.split(key, 4)
        fan_in = in_channels * 1 * kernel_size
        bound = 1.0 / math.sqrt(fan_in)
        wshape = (out_channels, in_channels, 1, kernel_size)  # OIHW, like torch
        self.w1 = jax.random.uniform(k1, wshape, jnp.float32, -bound, bound)
        self.b1 = jax.random.uniform(k2, (out_channels,), jnp.float32, -bound, bound)
        self.w2 = jax.random.uniform(k3, wshape, jnp.float32, -bound, bound)
        self.b2 = jax.random.uniform(k4, (out_channels,), jnp.float32, -bound, bound)

    def __call__(self, x, r2sDic, s2rDic, trajDic):
        # x: (N_nodes, B, H, Cin) -- matches torch x[t,:,:,:] being (B, H, Cin)
        del r2sDic  # unused by the forward pass (as in the torch reference)
        K, step = self.kernel_size, self.step
        Cin, Cout = self.in_channels, self.out_channels

        segs = [*s2rDic]
        traj_list = [trajDic[s] for s in segs]
        S = len(segs)
        Ntraj = len(traj_list[0])
        T = len(traj_list[0][0])
        # TODO(synk): ragged trajDic (per-segment Ntraj / per-trajectory T) is
        # not supported; it would need padding+masking or per-segment launches.
        assert all(len(tl) == Ntraj and all(len(tr) == T for tr in tl)
                   for tl in traj_list), "ragged trajDic not supported"
        traj_idx = jnp.asarray(traj_list, dtype=jnp.int32)        # (S, Ntraj, T)

        N_nodes, B, H, _cin = x.shape
        assert _cin == Cin
        W_out = T - (K - 1) * step
        assert W_out >= 1, "trajectory shorter than dilated kernel extent"

        BH = B * H
        tile_g = _choose_tile_g(BH)
        Gp = _round_up(_round_up(BH, 128), tile_g)

        # One small, un-duplicated transpose+cast pass: Cin leading, B*H lanes.
        xt = jnp.transpose(x, (0, 3, 1, 2)).reshape(N_nodes, Cin, BH)
        xt = xt.astype(jnp.bfloat16)
        if Gp != BH:
            xt = jnp.pad(xt, ((0, 0), (0, 0), (0, Gp - BH)))

        # Fused conv1/conv2 weight [2*Coutp, K*Cin]; columns tap-major to match
        # the in-kernel concat of the K gathered taps; rows padded to 8 so the
        # conv1/conv2 split is sublane-tile aligned.
        Coutp = _round_up(Cout, 8)

        def pack(w):                                    # w: (Cout, Cin, 1, K)
            wkc = jnp.transpose(w[:, :, 0, :], (0, 2, 1)).reshape(Cout, K * Cin)
            return jnp.pad(wkc, ((0, Coutp - Cout), (0, 0)))

        wf = jnp.concatenate([pack(self.w1), pack(self.w2)], axis=0)
        wf = wf.astype(jnp.bfloat16)                    # (2*Coutp, K*Cin)
        bf = jnp.concatenate([jnp.pad(self.b1, (0, Coutp - Cout)),
                              jnp.pad(self.b2, (0, Coutp - Cout))])
        bf = bf.reshape(2 * Coutp, 1).astype(jnp.float32)

        y = pcn_traj_gated_conv(xt, traj_idx, wf, bf, K=K, step=step,
                                W_out=W_out, Coutp=Coutp, Ntraj=Ntraj,
                                tile_g=tile_g)          # (S, W_out, Coutp, Gp)
        y = y[:, :, :Cout, :BH].reshape(S, W_out, Cout, B, H)
        return jnp.transpose(y, (3, 0, 2, 4, 1))        # (B, S, Cout, H, W_out)


# ---------------- pure-JAX reference (mirrors the torch forward) -------------
def _conv2d_nchw(x, w, b, dilation):
    out = jax.lax.conv_general_dilated(
        x, w, window_strides=(1, 1), padding="VALID",
        rhs_dilation=(dilation, dilation),
        dimension_numbers=("NCHW", "OIHW", "NCHW"))
    return out + b.reshape(1, -1, 1, 1)


def reference_forward(layer, x, s2rDic, trajDic):
    # Inputs/weights rounded through bf16 so the comparison isolates kernel
    # correctness from the intentional bf16 cast used for HBM traffic.
    xq = x.astype(jnp.bfloat16).astype(jnp.float32)
    w1q = layer.w1.astype(jnp.bfloat16).astype(jnp.float32)
    w2q = layer.w2.astype(jnp.bfloat16).astype(jnp.float32)
    h = []
    for s in s2rDic:
        temp = []
        for traj in trajDic[s]:
            t1 = jnp.stack([xq[t] for t in traj])          # (T, B, H, Cin)
            t1 = jnp.transpose(t1, (1, 3, 2, 0))           # (B, Cin, H, T)
            c1 = _conv2d_nchw(t1, w1q, layer.b1, layer.step)
            c2 = _conv2d_nchw(t1, w2q, layer.b2, layer.step)
            temp.append(c1 * jax.nn.sigmoid(c2))
        h.append(jnp.mean(jnp.stack(temp), axis=0))
    h = jnp.stack(h)
    return jnp.transpose(h, (1, 0, 2, 3, 4))


if __name__ == "__main__":
    key = jax.random.PRNGKey(0)
    kx, klayer = jax.random.split(key)

    N_nodes, B, H, Cin, Cout = 10, 4, 16, 4, 4
    K, step = 2, 2

    x = jax.random.normal(kx, (N_nodes, B, H, Cin), jnp.float32)

    r2sDic = {0: 0, 1: 0, 2: 1, 3: 1}            # unused by forward (as in torch)
    s2rDic = {0: [0, 1], 1: [2, 3]}
    trajDic = {
        0: [[0, 1, 2, 3, 4], [1, 2, 3, 4, 5]],
        1: [[2, 3, 4, 5, 6], [5, 6, 7, 8, 9]],
    }

    layer = PCNLayerPallas(Cin, Cout, kernel_size=K, step=step, key=klayer)

    out = jax.block_until_ready(layer(x, r2sDic, s2rDic, trajDic))
    ref = jax.block_until_ready(reference_forward(layer, x, s2rDic, trajDic))

    assert out.shape == ref.shape == (B, 2, Cout, H, 3), (out.shape, ref.shape)
    err = float(jnp.max(jnp.abs(out - ref)))
    assert jnp.allclose(out, ref, atol=1e-4, rtol=1e-4), f"mismatch, max err={err}"

    print("KERNEL_OK")
</pallas_src>

<mosaic_0001>
module attributes {stable_mosaic.version = 11 : i64} {
  func.func @_pcn_kernel(%arg0: i32, %arg1: i32, %arg2: i32, %arg3: i32, %arg4: memref<2x2x5xi32, #tpu.memory_space<smem>>, %arg5: memref<1x4x128xbf16, #tpu.memory_space<vmem>>, %arg6: memref<1x4x128xbf16, #tpu.memory_space<vmem>>, %arg7: memref<16x8xbf16, #tpu.memory_space<vmem>>, %arg8: memref<16x1xf32, #tpu.memory_space<vmem>>, %arg9: memref<1x1x8x128xf32, #tpu.memory_space<vmem>>) attributes {dimension_semantics = [#tpu.dimension_semantics<parallel>, #tpu.dimension_semantics<parallel>, #tpu.dimension_semantics<parallel>, #tpu.dimension_semantics<arbitrary>], iteration_bounds = array<i64: 1, 2, 3, 2>, scalar_prefetch = 1 : i64, scratch_operands = 0 : i64, tpu.core_type = #tpu.core_type<tc>, window_params = [{transform_indices = @transform_0, window_bounds = array<i64: 1, 4, 128>}, {transform_indices = @transform_1, window_bounds = array<i64: 1, 4, 128>}, {pipeline_mode = #tpu.pipeline_mode<synchronous>, transform_indices = @transform_2, window_bounds = array<i64: 16, 8>}, {pipeline_mode = #tpu.pipeline_mode<synchronous>, transform_indices = @transform_3, window_bounds = array<i64: 16, 1>}, {transform_indices = @transform_4, window_bounds = array<i64: 1, 1, 8, 128>}]} {
    %c0 = arith.constant 0 : index
    %c0_0 = arith.constant 0 : index
    %c0_1 = arith.constant 0 : index
    %0 = vector.load %arg5[%c0, %c0_0, %c0_1] : memref<1x4x128xbf16, #tpu.memory_space<vmem>>, vector<1x4x128xbf16>
    %1 = vector.shape_cast %0 : vector<1x4x128xbf16> to vector<4x128xbf16>
    %c0_2 = arith.constant 0 : index
    %c0_3 = arith.constant 0 : index
    %c0_4 = arith.constant 0 : index
    %2 = vector.load %arg6[%c0_2, %c0_3, %c0_4] : memref<1x4x128xbf16, #tpu.memory_space<vmem>>, vector<1x4x128xbf16>
    %3 = vector.shape_cast %2 : vector<1x4x128xbf16> to vector<4x128xbf16>
    %4 = tpu.concatenate %1, %3 in 0 : vector<4x128xbf16>, vector<4x128xbf16> -> vector<8x128xbf16>
    %c0_5 = arith.constant 0 : index
    %c0_6 = arith.constant 0 : index
    %5 = vector.load %arg7[%c0_5, %c0_6] : memref<16x8xbf16, #tpu.memory_space<vmem>>, vector<16x8xbf16>
    %cst = arith.constant dense<0.000000e+00> : vector<16x128xf32>
    %6 = tpu.matmul %5, %4, %cst {dimension_numbers = #tpu.dot_dimension_numbers<[1], [0], [0], [1], [0, 0, 1, 1], [], []>} : vector<16x8xbf16>, vector<8x128xbf16>, vector<16x128xf32> -> vector<16x128xf32>
    %c0_7 = arith.constant 0 : index
    %c0_8 = arith.constant 0 : index
    %7 = vector.load %arg8[%c0_7, %c0_8] : memref<16x1xf32, #tpu.memory_space<vmem>>, vector<16x1xf32>
    %8 = vector.broadcast %7 : vector<16x1xf32> to vector<16x128xf32>
    %9 = arith.addf %6, %8 : vector<16x128xf32>
    %10 = vector.extract_strided_slice %9 {offsets = [0, 0], sizes = [8, 128], strides = [1, 1]} : vector<16x128xf32> to vector<8x128xf32>
    %11 = vector.extract_strided_slice %9 {offsets = [8, 0], sizes = [8, 128], strides = [1, 1]} : vector<16x128xf32> to vector<8x128xf32>
    %12 = arith.negf %11 : vector<8x128xf32>
    %13 = math.exp %12 : vector<8x128xf32>
    %cst_9 = arith.constant 1.000000e+00 : f32
    %14 = vector.broadcast %cst_9 : f32 to vector<8x128xf32>
    %15 = arith.addf %14, %13 : vector<8x128xf32>
    %16 = arith.divf %14, %15 : vector<8x128xf32>
    %17 = arith.mulf %10, %16 : vector<8x128xf32>
    %cst_10 = arith.constant 5.000000e-01 : f32
    %18 = vector.broadcast %cst_10 : f32 to vector<8x128xf32>
    %19 = arith.mulf %17, %18 : vector<8x128xf32>
    %c0_i32 = arith.constant 0 : i32
    %20 = arith.cmpi eq, %arg3, %c0_i32 : i32
    %21 = arith.extui %20 : i1 to i32
    %c0_i32_11 = arith.constant 0 : i32
    %22 = arith.cmpi ne, %21, %c0_i32_11 : i32
    scf.if %22 {
      %c0_14 = arith.constant 0 : index
      %c0_15 = arith.constant 0 : index
      %c0_16 = arith.constant 0 : index
      %c0_17 = arith.constant 0 : index
      %26 = vector.load %arg9[%c0_14, %c0_15, %c0_16, %c0_17] : memref<1x1x8x128xf32, #tpu.memory_space<vmem>>, vector<1x1x8x128xf32>
      %27 = vector.shape_cast %26 : vector<1x1x8x128xf32> to vector<8x128xf32>
      %28 = vector.shape_cast %19 : vector<8x128xf32> to vector<1x1x8x128xf32>
      tpu.vector_store %arg9[%c0_14, %c0_15, %c0_16, %c0_17], %28 {strides = array<i32>} : memref<1x1x8x128xf32, #tpu.memory_space<vmem>>, vector<1x1x8x128xf32>,
    } else {
    }
    %c0_i32_12 = arith.constant 0 : i32
    %23 = arith.cmpi sgt, %arg3, %c0_i32_12 : i32
    %24 = arith.extui %23 : i1 to i32
    %c0_i32_13 = arith.constant 0 : i32
    %25 = arith.cmpi ne, %24, %c0_i32_13 : i32
    scf.if %25 {
      %c0_14 = arith.constant 0 : index
      %c0_15 = arith.constant 0 : index
      %c0_16 = arith.constant 0 : index
      %c0_17 = arith.constant 0 : index
      %26 = vector.load %arg9[%c0_14, %c0_15, %c0_16, %c0_17] : memref<1x1x8x128xf32, #tpu.memory_space<vmem>>, vector<1x1x8x128xf32>
      %27 = vector.shape_cast %26 : vector<1x1x8x128xf32> to vector<8x128xf32>
      %28 = arith.addf %27, %19 : vector<8x128xf32>
      %c0_18 = arith.constant 0 : index
      %c0_19 = arith.constant 0 : index
      %c0_20 = arith.constant 0 : index
      %c0_21 = arith.constant 0 : index
      %29 = vector.load %arg9[%c0_18, %c0_19, %c0_20, %c0_21] : memref<1x1x8x128xf32, #tpu.memory_space<vmem>>, vector<1x1x8x128xf32>
      %30 = vector.shape_cast %29 : vector<1x1x8x128xf32> to vector<8x128xf32>
      %31 = vector.shape_cast %28 : vector<8x128xf32> to vector<1x1x8x128xf32>
      tpu.vector_store %arg9[%c0_18, %c0_19, %c0_20, %c0_21], %31 {strides = array<i32>} : memref<1x1x8x128xf32, #tpu.memory_space<vmem>>, vector<1x1x8x128xf32>,
    } else {
    }
    return
  }
  func.func @transform_0(%arg0: i32, %arg1: i32, %arg2: i32, %arg3: i32, %arg4: memref<2x2x5xi32, #tpu.memory_space<smem>>) -> (i32, i32, i32) {
    %c0_i32 = arith.constant 0 : i32
    %0 = arith.addi %arg2, %c0_i32 : i32
    %1 = arith.index_cast %arg1 : i32 to index
    %2 = arith.index_cast %arg3 : i32 to index
    %3 = arith.index_cast %0 : i32 to index
    %4 = memref.load %arg4[%1, %2, %3] : memref<2x2x5xi32, #tpu.memory_space<smem>>
    %c0_i32_0 = arith.constant 0 : i32
    %c0_i32_1 = arith.constant 0 : i32
    return %4, %c0_i32_0, %arg0 : i32, i32, i32
  }
  func.func @transform_1(%arg0: i32, %arg1: i32, %arg2: i32, %arg3: i32, %arg4: memref<2x2x5xi32, #tpu.memory_space<smem>>) -> (i32, i32, i32) {
    %c2_i32 = arith.constant 2 : i32
    %0 = arith.addi %arg2, %c2_i32 : i32
    %1 = arith.index_cast %arg1 : i32 to index
    %2 = arith.index_cast %arg3 : i32 to index
    %3 = arith.index_cast %0 : i32 to index
    %4 = memref.load %arg4[%1, %2, %3] : memref<2x2x5xi32, #tpu.memory_space<smem>>
    %c0_i32 = arith.constant 0 : i32
    %c0_i32_0 = arith.constant 0 : i32
    return %4, %c0_i32, %arg0 : i32, i32, i32
  }
  func.func @transform_2(%arg0: i32, %arg1: i32, %arg2: i32, %arg3: i32, %arg4: memref<2x2x5xi32, #tpu.memory_space<smem>>) -> (i32, i32) {
    %c0_i32 = arith.constant 0 : i32
    %c0_i32_0 = arith.constant 0 : i32
    %c0_i32_1 = arith.constant 0 : i32
    return %c0_i32, %c0_i32_0 : i32, i32
  }
  func.func @transform_3(%arg0: i32, %arg1: i32, %arg2: i32, %arg3: i32, %arg4: memref<2x2x5xi32, #tpu.memory_space<smem>>) -> (i32, i32) {
    %c0_i32 = arith.constant 0 : i32
    %c0_i32_0 = arith.constant 0 : i32
    %c0_i32_1 = arith.constant 0 : i32
    return %c0_i32, %c0_i32_0 : i32, i32
  }
  func.func @transform_4(%arg0: i32, %arg1: i32, %arg2: i32, %arg3: i32, %arg4: memref<2x2x5xi32, #tpu.memory_space<smem>>) -> (i32, i32, i32, i32) {
    %c0_i32 = arith.constant 0 : i32
    %c0_i32_0 = arith.constant 0 : i32
    return %arg1, %arg2, %c0_i32, %arg0 : i32, i32, i32, i32
  }
}

</mosaic_0001>

<llo_original>
// kernel: tpu_custom_call.1
$region0: #{tpu_custom_call.1}
  #allocation0 [shape = 'u32[]', space=smem, size = 0x4, offset = 0x4, fixed_abs, tag = 'smem constant byte address 0x4 - core index']
  #allocation1 [shape = 'u32[144,128]{1,0:T(1,128)}', space=vmem, size = 0x12000, scoped, tag = 'internal scratch']
  #allocation2 [shape = 's32[1]{0}', space=sflag, size = 0x4, scoped, tag = 'scoped memory for tpu_custom_call.1']
  #allocation3 [shape = 'u8[2048]{0}', space=smem, size = 0x800, scoped, tag = 'prefetched SMEM operand 0']
  %s0 = inlined_call_operand.vmem [shape: s32[2,2,5], index: 0, kind: input, shape index: {}]
  %s1 = inlined_call_operand.vmem [shape: bf16[10,4,128], index: 1, kind: input, shape index: {}]
  %s2 = inlined_call_operand.hbm [shape: bf16[10,4,128], index: 2, kind: input, shape index: {}]
  %s3 = inlined_call_operand.vmem [shape: bf16[16,8], index: 3, kind: input, shape index: {}]
  %s4 = inlined_call_operand.vmem [shape: f32[16,1], index: 4, kind: input, shape index: {}]
  %s5 = inlined_call_operand.hbm [shape: f32[2,3,8,128], index: 5, kind: output, shape index: {}]
  %s6 = sld [smem:[#allocation0]]
  $region61: #{tpu_custom_call.1} parent=0
    _
  %s8 = ssub.s32 1, %s6
  %s9 = scalar_select 0, %s8, %s6
  %s10 = sshll.u32 %s0, 4
  %s11 = int_to_ptr.vmem [resolvable:$true] %s10
  %13 = dma.vmem_to_smem %s11, 64, [#allocation3], [#allocation2]
  %14 = dma.done [#allocation2], 64
  %15 = sfence
  $region1: #{tpu_custom_call.1} parent=0
    #allocation4 [shape = 'u8[2048]{0}', space=vmem, size = 0x800, scoped, tag = 'input window, operand 2']
    #allocation5 [shape = 's32[2]{0}', space=sflag, size = 0x8, scoped, tag = 'scoped memory for tpu_custom_call.1']
    #allocation6 [shape = 's32[2]{0}', space=sflag, size = 0x8, scoped, tag = 'scoped memory for tpu_custom_call.1']
    #allocation7 [shape = 'u8[8192]{0}', space=vmem, size = 0x2000, scoped, tag = 'output window, operand 0']
    %16 = vsyncpa [#allocation5], 0
    %s17 = scalar_lea.sflag [#allocation5], 1
    %18 = vsyncpa %s17, 0
    %19 = vsyncpa [#allocation6], 0
    %s20 = scalar_lea.sflag [#allocation6], 1
    %21 = vsyncpa %s20, 0
    loop: start=0, step=1, limit=14
    $region2: #{tpu_custom_call.1} parent=1 // loop_pre_header
      _
    $region3: #{tpu_custom_call.1} parent=1 // loop_header
      %s23 = sphi 0, %s27
      %p24 = scmp.ge.s32.totalorder %s23, 14
      %s30 = sphi 0, %s56
      %s31 = sphi 0, %s52
      %s32 = sphi 0, %s48
      %s33 = sphi 0, %s44
      %s34 = sphi 0, %s30
      %s35 = sphi 0, %s31
      %s36 = sphi 0, %s32
      %s37 = sphi 0, %s33
      %s38 = sphi 0, %s34
      %s39 = sphi 0, %s35
      %s40 = sphi 0, %s36
      %s41 = sphi 0, %s37
      %s81 = sphi 0, %s83
      %s84 = sphi 0, %s81
      %s85 = sphi 0, %s84
      %s101 = sphi 0, %s85
      %s131 = sphi 0, %s133
      %s134 = sphi 0, %s131
      %s135 = sphi 0, %s134
      %s151 = sphi 0, %s135
      %s155 = sphi 0, %s155
      %s157 = sphi 0, %s155
      %s158 = sphi 0, %s157
      %s172 = sphi 0, %s158
      %s176 = sphi 0, %s176
      %s178 = sphi 0, %s176
      %s179 = sphi 0, %s178
      %s193 = sphi 0, %s179
      %s203 = sphi 0, %s205
      %s206 = sphi 0, %s203
      %s207 = sphi 0, %s206
      %s223 = sphi 0, %s207
    $region4: #{tpu_custom_call.1} parent=1 // loop_header_branch
      %26 = sbr.rel (%p24) target = $region8
    $region5: #{tpu_custom_call.1} parent=1 // loop_body
      %s28 = ssub.s32 %s23, 1
      %s29 = ssub.s32 %s23, 2
      %s42 = sadd.s32 1, %s33
      %p43 = scmp.ge.s32.totalorder %s42, 2
      %s44 = scalar_select %p43, 0, %s42
      %s45 = sadd.s32 1, %s32
      %s46 = scalar_select %p43, %s45, %s32
      %p47 = scmp.ge.s32.totalorder %s46, 3
      %s48 = scalar_select %p47, 0, %s46
      %s49 = sadd.s32 1, %s31
      %s50 = scalar_select %p47, %s49, %s31
      %p51 = scmp.ge.s32.totalorder %s50, 2
      %s52 = scalar_select %p51, 0, %s50
      %s53 = sadd.s32 1, %s30
      %s54 = scalar_select %p51, %s53, %s30
      %p55 = scmp.ge.s32.totalorder %s54, 1
      %s56 = scalar_select %p55, 0, %s54
      %s57 = sshra.s32 %s32, 7
      %s58 = sand.u32 %s32, 127
      %s59 = sadd.s32 %s57, %s33
      %s60 = smul.u32 %s31, 2
      %s61 = sadd.s32 %s59, %s60
      %s62 = smul.u32 %s61, 128
      %s63 = sshra.s32 %s32, 7
      %s64 = sand.u32 %s32, 127
      %s65 = sadd.s32 %s62, %s64
      %s66 = sld [smem:[#allocation3 + %s65]]
      %s67 = sshra.s32 %s48, 7
      %s68 = sand.u32 %s48, 127
      %s69 = sadd.s32 %s67, %s44
      %s70 = smul.u32 %s52, 2
      %s71 = sadd.s32 %s69, %s70
      %s72 = smul.u32 %s71, 128
      %s73 = sshra.s32 %s48, 7
      %s74 = sand.u32 %s48, 127
      %s75 = sadd.s32 %s72, %s74
      %s76 = sld [smem:[#allocation3 + %s75]]
      %s77 = ssub.s32 %s66, %s76
      %s78 = ssub.s32 %s30, %s56
      %s79 = sor.u32 %s77, %s78
      %p80 = scmp.eq.s32.totalorder %s79, 0
      %s82 = sadd.s32 %s81, 1
      %s83 = scalar_select %p80, %s81, %s82
      %p86 = pneg %p80
      %p87 = scmp.eq.s32.totalorder %s23, 11
      %p88 = por %p86, %p87
      %p89 = scmp.ne.s32.totalorder %s81, %s84
      %p90 = scmp.eq.s32.totalorder %s23, 0
      %p91 = por %p89, %p90
      %p92 = scmp.ne.s32.totalorder %s81, %s84
      %p93 = scmp.eq.s32.totalorder %s28, 11
      %p94 = por %p92, %p93
      %p95 = scmp.ne.s32.totalorder %s84, %s85
      %p96 = scmp.eq.s32.totalorder %s28, 0
      %p97 = por %p95, %p96
      %p98 = scmp.ne.s32.totalorder %s84, %s85
      %p99 = scmp.eq.s32.totalorder %s29, 11
      %p100 = por %p98, %p99
      %p102 = scmp.ne.s32.totalorder %s85, %s101
      %p103 = scmp.eq.s32.totalorder %s29, 0
      %p104 = por %p102, %p103
      %s105 = sadd.s32 %s32, 2
      %s106 = sshra.s32 %s105, 7
      %s107 = sand.u32 %s105, 127
      %s108 = sadd.s32 %s106, %s33
      %s109 = smul.u32 %s31, 2
      %s110 = sadd.s32 %s108, %s109
      %s111 = smul.u32 %s110, 128
      %s112 = sshra.s32 %s105, 7
      %s113 = sand.u32 %s105, 127
      %s114 = sadd.s32 %s111, %s113
      %s115 = sld [smem:[#allocation3 + %s114]]
      %s116 = sadd.s32 %s48, 2
      %s117 = sshra.s32 %s116, 7
      %s118 = sand.u32 %s116, 127
      %s119 = sadd.s32 %s117, %s44
      %s120 = smul.u32 %s52, 2
      %s121 = sadd.s32 %s119, %s120
      %s122 = smul.u32 %s121, 128
      %s123 = sshra.s32 %s116, 7
      %s124 = sand.u32 %s116, 127
      %s125 = sadd.s32 %s122, %s124
      %s126 = sld [smem:[#allocation3 + %s125]]
      %s127 = ssub.s32 %s115, %s126
      %s128 = ssub.s32 %s30, %s56
      %s129 = sor.u32 %s127, %s128
      %p130 = scmp.eq.s32.totalorder %s129, 0
      %s132 = sadd.s32 %s131, 1
      %s133 = scalar_select %p130, %s131, %s132
      %p136 = pneg %p130
      %p137 = scmp.eq.s32.totalorder %s23, 11
      %p138 = por %p136, %p137
      %p139 = scmp.ne.s32.totalorder %s131, %s134
      %p140 = scmp.eq.s32.totalorder %s23, 0
      %p141 = por %p139, %p140
      %p142 = scmp.ne.s32.totalorder %s131, %s134
      %p143 = scmp.eq.s32.totalorder %s28, 11
      %p144 = por %p142, %p143
      %p145 = scmp.ne.s32.totalorder %s134, %s135
      %p146 = scmp.eq.s32.totalorder %s28, 0
      %p147 = por %p145, %p146
      %p148 = scmp.ne.s32.totalorder %s134, %s135
      %p149 = scmp.eq.s32.totalorder %s29, 11
      %p150 = por %p148, %p149
      %p152 = scmp.ne.s32.totalorder %s135, %s151
      %p153 = scmp.eq.s32.totalorder %s29, 0
      %p154 = por %p152, %p153
      %s156 = sadd.s32 %s155, 1
      %p159 = scmp.eq.s32.totalorder %s23, 11
      %p160 = scmp.ne.s32.totalorder %s155, %s157
      %p161 = scmp.eq.s32.totalorder %s23, 0
      %p162 = por %p160, %p161
      %p163 = scmp.ne.s32.totalorder %s155, %s157
      %p164 = scmp.eq.s32.totalorder %s28, 11
      %p165 = por %p163, %p164
      %p166 = scmp.ne.s32.totalorder %s157, %s158
      %p167 = scmp.eq.s32.totalorder %s28, 0
      %p168 = por %p166, %p167
      %p169 = scmp.ne.s32.totalorder %s157, %s158
      %p170 = scmp.eq.s32.totalorder %s29, 11
      %p171 = por %p169, %p170
      %p173 = scmp.ne.s32.totalorder %s158, %s172
      %p174 = scmp.eq.s32.totalorder %s29, 0
      %p175 = por %p173, %p174
      %s177 = sadd.s32 %s176, 1
      %p180 = scmp.eq.s32.totalorder %s23, 11
      %p181 = scmp.ne.s32.totalorder %s176, %s178
      %p182 = scmp.eq.s32.totalorder %s23, 0
      %p183 = por %p181, %p182
      %p184 = scmp.ne.s32.totalorder %s176, %s178
      %p185 = scmp.eq.s32.totalorder %s28, 11
      %p186 = por %p184, %p185
      %p187 = scmp.ne.s32.totalorder %s178, %s179
      %p188 = scmp.eq.s32.totalorder %s28, 0
      %p189 = por %p187, %p188
      %p190 = scmp.ne.s32.totalorder %s178, %s179
      %p191 = scmp.eq.s32.totalorder %s29, 11
      %p192 = por %p190, %p191
      %p194 = scmp.ne.s32.totalorder %s179, %s193
      %p195 = scmp.eq.s32.totalorder %s29, 0
      %p196 = por %p194, %p195
      %s197 = ssub.s32 %s31, %s52
      %s198 = ssub.s32 %s32, %s48
      %s199 = sor.u32 %s197, %s198
      %s200 = ssub.s32 %s30, %s56
      %s201 = sor.u32 %s199, %s200
      %p202 = scmp.eq.s32.totalorder %s201, 0
      %s204 = sadd.s32 %s203, 1
      %s205 = scalar_select %p202, %s203, %s204
      %p208 = pneg %p202
      %p209 = scmp.eq.s32.totalorder %s23, 11
      %p210 = por %p208, %p209
      %p211 = scmp.ne.s32.totalorder %s203, %s206
      %p212 = scmp.eq.s32.totalorder %s23, 0
      %p213 = por %p211, %p212
      %p214 = scmp.ne.s32.totalorder %s203, %s206
      %p215 = scmp.eq.s32.totalorder %s28, 11
      %p216 = por %p214, %p215
      %p217 = scmp.ne.s32.totalorder %s206, %s207
      %p218 = scmp.eq.s32.totalorder %s28, 0
      %p219 = por %p217, %p218
      %p220 = scmp.ne.s32.totalorder %s206, %s207
      %p221 = scmp.eq.s32.totalorder %s29, 11
      %p222 = por %p220, %p221
      %p224 = scmp.ne.s32.totalorder %s207, %s223
      %p225 = scmp.eq.s32.totalorder %s29, 0
      %p226 = por %p224, %p225
      %p227 = scmp.le.s32.totalorder 1, %s23
      %p228 = scmp.lt.s32.totalorder %s23, 13
      %p229 = pnand %p227, %p228
      %p230 = pneg %p229
      // Predicated region
      $region9: #{tpu_custom_call.1} parent=5 // pred_check
        _
      $region10: #{tpu_custom_call.1} parent=5 // pred_check_branch
        %232 = sbr.rel (%p229) target = $region12
      $region11: #{tpu_custom_call.1} parent=5 // pred_region
        %s233 = ssub.s32 %s23, 1
        // Predicated region
        $region13: #{tpu_custom_call.1} parent=11 // pred_check
          %p234 = pneg %p168
        $region14: #{tpu_custom_call.1} parent=11 // pred_check_branch
          %236 = sbr.rel (%p234) target = $region16
        $region15: #{tpu_custom_call.1} parent=11 // pred_region
          _
        $region16: #{tpu_custom_call.1} parent=11 // pred_fallthru
          _
        // Predicated region
        $region17: #{tpu_custom_call.1} parent=11 // pred_check
          %p237 = pneg %p189
        $region18: #{tpu_custom_call.1} parent=11 // pred_check_branch
          %239 = sbr.rel (%p237) target = $region20
        $region19: #{tpu_custom_call.1} parent=11 // pred_region
          _
        $region20: #{tpu_custom_call.1} parent=11 // pred_fallthru
          _
      $region12: #{tpu_custom_call.1} parent=5 // pred_fallthru
        _
      %p240 = scmp.lt.s32.totalorder %s23, 12
      // Predicated region
      $region21: #{tpu_custom_call.1} parent=5 // pred_check
        %p241 = pneg %p240
      $region22: #{tpu_custom_call.1} parent=5 // pred_check_branch
        %243 = sbr.rel (%p241) target = $region24
      $region23: #{tpu_custom_call.1} parent=5 // pred_region
        // Predicated region
        $region25: #{tpu_custom_call.1} parent=23 // pred_check
          %p244 = pneg %p91
        $region26: #{tpu_custom_call.1} parent=23 // pred_check_branch
          %246 = sbr.rel (%p244) target = $region28
        $region27: #{tpu_custom_call.1} parent=23 // pred_region
          %s247 = sshra.s32 %s32, 7
          %s248 = sand.u32 %s32, 127
          %s249 = sadd.s32 %s247, %s33
          %s250 = smul.u32 %s31, 2
          %s251 = sadd.s32 %s249, %s250
          %s252 = smul.u32 %s251, 128
          %s253 = sshra.s32 %s32, 7
          %s254 = sand.u32 %s32, 127
          %s255 = sadd.s32 %s252, %s254
          %s256 = sld [smem:[#allocation3 + %s255]]
          %p257 = scmp.lt.s32.totalorder %s256, 9
          %s258 = scalar_select %p257, %s256, 9
          %p259 = scmp.lt.s32.totalorder %s30, 0
          %s260 = scalar_select %p259, %s30, 0
          %s261 = sadd.s32 %s260, %s258
          %s262 = smul.addr %s261, 2
          %s263 = scalar_lea.vmem %s1, %s262
          %s264 = sshra.s32 %s32, 7
          %s265 = sand.u32 %s32, 127
          %s266 = sadd.s32 %s264, %s33
          %s267 = smul.u32 %s31, 2
          %s268 = sadd.s32 %s266, %s267
          %s269 = smul.u32 %s268, 128
          %s270 = sshra.s32 %s32, 7
          %s271 = sand.u32 %s32, 127
          %s272 = sadd.s32 %s269, %s271
          %s273 = sld [smem:[#allocation3 + %s272]]
        $region28: #{tpu_custom_call.1} parent=23 // pred_fallthru
          _
        // Predicated region
        $region29: #{tpu_custom_call.1} parent=23 // pred_check
          %p274 = pneg %p141
        $region30: #{tpu_custom_call.1} parent=23 // pred_check_branch
          %276 = sbr.rel (%p274) target = $region32
        $region31: #{tpu_custom_call.1} parent=23 // pred_region
          %s277 = sand.u32 %s131, 1
          %s278 = scalar_lea.sflag [#allocation5], %s277
          %s279 = sand.u32 %s131, 1
          %s280 = smul.addr %s279, 2
          %s281 = scalar_lea.vmem [#allocation4], %s280
          %s282 = sadd.s32 %s32, 2
          %s283 = sshra.s32 %s282, 7
          %s284 = sand.u32 %s282, 127
          %s285 = sadd.s32 %s283, %s33
          %s286 = smul.u32 %s31, 2
          %s287 = sadd.s32 %s285, %s286
          %s288 = smul.u32 %s287, 128
          %s289 = sshra.s32 %s282, 7
          %s290 = sand.u32 %s282, 127
          %s291 = sadd.s32 %s288, %s290
          %s292 = sld [smem:[#allocation3 + %s291]]
          %s294 = ssub.s32 32, 32
          %295 = vsyncadd %s278, %s294
          %s296 = sadd.s32 %s30, %s292
          %s297 = smul.addr %s296, 32
          %s298 = scalar_lea.hbm %s2, %s297
          %s300 = sshll.u32 %s281, 4
          %s301 = int_to_ptr.vmem [resolvable:$true] %s300
          %303 = dma.hbm_to_vmem [thread:$0]  %s298, 32, %s301, %s278
        $region32: #{tpu_custom_call.1} parent=23 // pred_fallthru
          _
      $region24: #{tpu_custom_call.1} parent=5 // pred_fallthru
        _
      %p304 = scmp.le.s32.totalorder 1, %s23
      %p305 = scmp.lt.s32.totalorder %s23, 13
      %p306 = pnand %p304, %p305
      %p307 = pneg %p306
      // Predicated region
      $region33: #{tpu_custom_call.1} parent=5 // pred_check
        _
      $region34: #{tpu_custom_call.1} parent=5 // pred_check_branch
        %309 = sbr.rel (%p306) target = $region36
      $region35: #{tpu_custom_call.1} parent=5 // pred_region
        %s310 = ssub.s32 %s23, 1
        %s311 = sand.u32 %s134, 1
        %s312 = scalar_lea.sflag [#allocation5], %s311
        %s313 = sand.u32 %s134, 1
        %s314 = smul.addr %s313, 2
        %s315 = scalar_lea.vmem [#allocation4], %s314
        // Predicated region
        $region37: #{tpu_custom_call.1} parent=35 // pred_check
          %p316 = pneg %p147
        $region38: #{tpu_custom_call.1} parent=35 // pred_check_branch
          %318 = sbr.rel (%p316) target = $region40
        $region39: #{tpu_custom_call.1} parent=35 // pred_region
          %319 = dma.done %s312, 32
        $region40: #{tpu_custom_call.1} parent=35 // pred_fallthru
          _
        %s320 = sshra.s32 %s36, 7
        %s321 = sand.u32 %s36, 127
        %s322 = sadd.s32 %s320, %s37
        %s323 = smul.u32 %s35, 2
        %s324 = sadd.s32 %s322, %s323
        %s325 = smul.u32 %s324, 128
        %s326 = sshra.s32 %s36, 7
        %s327 = sand.u32 %s36, 127
        %s328 = sadd.s32 %s325, %s327
        %s329 = sld [smem:[#allocation3 + %s328]]
        %p330 = scmp.lt.s32.totalorder %s329, 9
        %s331 = scalar_select %p330, %s329, 9
        %p332 = scmp.lt.s32.totalorder %s34, 0
        %s333 = scalar_select %p332, %s34, 0
        %s334 = sadd.s32 %s333, %s331
        %s335 = smul.addr %s334, 2
        %s336 = scalar_lea.vmem %s1, %s335
        %p337 = pneg %p97
        %p338 = pneg %p94
        %s339 = sand.u32 %s134, 1
        %s340 = scalar_lea.sflag [#allocation5], %s339
        %s341 = sand.u32 %s134, 1
        %s342 = smul.addr %s341, 2
        %s343 = scalar_lea.vmem [#allocation4], %s342
        %p344 = pneg %p147
        %p345 = pneg %p144
        %p346 = pneg %p168
        %p347 = pneg %p165
        %p348 = pneg %p189
        %p349 = pneg %p186
        %p350 = pneg %p219
        %p351 = pneg %p216
        %s352 = sand.u32 %s206, 1
        %s353 = scalar_lea.sflag [#allocation6], %s352
        %s354 = sand.u32 %s206, 1
        %s355 = smul.addr %s354, 8
        %s356 = scalar_lea.vmem [#allocation7], %s355
        %s357 = sshra.s32 %s36, 7
        %s358 = sand.u32 %s36, 127
        %s359 = sadd.s32 %s357, %s37
        %s360 = smul.u32 %s35, 2
        %s361 = sadd.s32 %s359, %s360
        %s362 = smul.u32 %s361, 128
        %s363 = sshra.s32 %s36, 7
        %s364 = sand.u32 %s36, 127
        %s365 = sadd.s32 %s362, %s364
        %s366 = sld [smem:[#allocation3 + %s365]]
        %p367 = scmp.lt.s32.totalorder %s366, 9
        %s368 = scalar_select %p367, %s366, 9
        %p369 = scmp.lt.s32.totalorder %s34, 0
        %s370 = scalar_select %p369, %s34, 0
        %s371 = sadd.s32 %s370, %s368
        %s372 = smul.addr %s371, 2
        %s373 = scalar_lea.vmem %s1, %s372
        %s374 = sshra.s32 %s36, 7
        %s375 = sand.u32 %s36, 127
        %s376 = sadd.s32 %s374, %s37
        %s377 = smul.u32 %s35, 2
        %s378 = sadd.s32 %s376, %s377
        %s379 = smul.u32 %s378, 128
        %s380 = sshra.s32 %s36, 7
        %s381 = sand.u32 %s36, 127
        %s382 = sadd.s32 %s379, %s381
        %s383 = sld [smem:[#allocation3 + %s382]]
        %s384 = sadd.s32 %s36, 2
        %s385 = sshra.s32 %s384, 7
        %s386 = sand.u32 %s384, 127
        %s387 = sadd.s32 %s385, %s37
        %s388 = smul.u32 %s35, 2
        %s389 = sadd.s32 %s387, %s388
        %s390 = smul.u32 %s389, 128
        %s391 = sshra.s32 %s384, 7
        %s392 = sand.u32 %s384, 127
        %s393 = sadd.s32 %s390, %s392
        %s394 = sld [smem:[#allocation3 + %s393]]
        %v396 = vld [vmem:[%s373] sm:$0x3]
        %v397 = vld [vmem:[%s315] sm:$0x3]
        %v399 = vcombine.low %v397, %v397
        %v401 = vunpack.c.l.s4 1983009808
        %v402 = vunpack.c.0.s8 %v401
        %v403 = vlaneseq
        %v404 = vshrl.u32 %v403, 7
        %v405 = vsub.s32 %v402, %v404
        %v406 = vrot.slane %v399, %v405
        %vm407 = vcmask 1041408
        %v410 = vsel %vm407, %v396, %v406
        %v411 = vld [vmem:[%s3] sm:$0xf]
        %v412 = vld [vmem:[%s3 + $0x4] sm:$0xf]
        %v413 = vld [vmem:[%s4] sm:$0xff]
        %v414 = vld [vmem:[%s4 + $0x8] sm:$0xff]
        %416 = vset.pattern.permute.xlu0 0
        %417 = vperm.xlu0 %416, %v413
        %v418 = vpop.permute.xlu0 %417
        %421 = vset.pattern.permute.xlu0 0
        %422 = vperm.xlu0 %421, %v414
        %v423 = vpop.permute.xlu0 %422
        %v427 = vunpack.c.l.b16 %v411
        %v428 = vunpack.c.l.b16 %v412
        %v429 = vpack.c.b16 %v428, %v427
        %vm430 = vcmask 64512
        %v432 = vsel %vm430, %v429, 0
        %vm434 = vcmask 1043456
        %v435 = vsel %vm434, %v410, 0
        %437 = vmatprep.subr.bf16.mxu0 0
        %438 = vmatpush1.bf16.msra.mxu0 %v435
        %439 = vmatprep.subr.bf16.mxu0 0
        %440 = vmatpush1.bf16.msra.mxu0 0
        %441 = vmatprep.subr.bf16.mxu0 0
        %442 = vmatpush1.bf16.msra.mxu0 0
        %443 = vmatprep.subr.bf16.mxu0 0
        %444 = vmatpush1.bf16.msra.mxu0 0
        %445 = vmatprep.subr.bf16.mxu0 0
        %446 = vmatpush1.bf16.msra.mxu0 0
        %447 = vmatprep.subr.bf16.mxu0 0
        %448 = vmatpush1.bf16.msra.mxu0 0
        %449 = vmatprep.subr.bf16.mxu0 0
        %450 = vmatpush1.bf16.msra.mxu0 0
        %451 = vmatprep.subr.bf16.mxu0 0
        %452 = vmatpush1.bf16.msra.mxu0 0
        %453 = vmatprep.subr.bf16.mxu0 0
        %454 = vmatpush1.bf16.msra.mxu0 0
        %455 = vmatprep.subr.bf16.mxu0 0
        %456 = vmatpush1.bf16.msra.mxu0 0
        %457 = vmatprep.subr.bf16.mxu0 0
        %458 = vmatpush1.bf16.msra.mxu0 0
        %459 = vmatprep.subr.bf16.mxu0 0
        %460 = vmatpush1.bf16.msra.mxu0 0
        %461 = vmatprep.subr.bf16.mxu0 0
        %462 = vmatpush1.bf16.msra.mxu0 0
        %463 = vmatprep.subr.bf16.mxu0 0
        %464 = vmatpush1.bf16.msra.mxu0 0
        %465 = vmatprep.subr.bf16.mxu0 0
        %466 = vmatpush1.bf16.msra.mxu0 0
        %467 = vmatprep.subr.bf16.mxu0 0
        %468 = vmatpush1.bf16.msra.mxu0 0
        %469 = vmatprep.mubr.bf16.mxu0 0
        %470 = vmatmul.mubr.bf16.gmra.mrb[0].mxu0 %v432
        %v471 = vpop.f32.mrb[0].mxu0
        %v472 = vadd.f32 %v418, %v471
        %v473 = vpop.f32.mrb[0].mxu0
        %v474 = vpop.f32.mrb[0].mxu0
        %v475 = vadd.f32 %v423, %v474
        %v476 = vpop.f32.mrb[0].mxu0
        %477 = vdwg.mxu0
        %v478 = vxor.u32 %v475, 2147483648
        %v479 = vmul.f32 %v478, 1.442695
        %v480 = vpow.pop %v479
        %v481 = vadd.f32 %v480, 1.0
        %v482 = vrcp.pop %v481
        %v483 = vmul.f32 1.0, %v482
        %v484 = vmul.f32 %v472, %v483
        %v485 = vmul.f32 %v484, 0.5
        %p486 = scmp.eq.s32.totalorder %s37, 0
        // Predicated region
        $region41: #{tpu_custom_call.1} parent=35 // pred_check
          %p487 = pneg %p486
        $region42: #{tpu_custom_call.1} parent=35 // pred_check_branch
          %489 = sbr.rel (%p487) target = $region44
        $region43: #{tpu_custom_call.1} parent=35 // pred_region
          %490 = vst [vmem:[%s356] sm:$0xff] %v485
        $region44: #{tpu_custom_call.1} parent=35 // pred_fallthru
          _
        %p491 = scmp.gt.s32.totalorder %s37, 0
        // Predicated region
        $region45: #{tpu_custom_call.1} parent=35 // pred_check
          %p492 = pneg %p491
        $region46: #{tpu_custom_call.1} parent=35 // pred_check_branch
          %494 = sbr.rel (%p492) target = $region48
        $region47: #{tpu_custom_call.1} parent=35 // pred_region
          %v495 = vld [vmem:[%s356] sm:$0xff]
          %v496 = vadd.f32 %v495, %v485
          %497 = vst [vmem:[%s356] sm:$0xff] %v496
        $region48: #{tpu_custom_call.1} parent=35 // pred_fallthru
          _
        %s498 = sand.u32 %s206, 1
        %s499 = scalar_lea.sflag [#allocation6], %s498
        %s500 = sand.u32 %s206, 1
        %s501 = smul.addr %s500, 8
        %s502 = scalar_lea.vmem [#allocation7], %s501
        // Predicated region
        $region49: #{tpu_custom_call.1} parent=35 // pred_check
          %p503 = pneg %p216
        $region50: #{tpu_custom_call.1} parent=35 // pred_check_branch
          %505 = sbr.rel (%p503) target = $region52
        $region51: #{tpu_custom_call.1} parent=35 // pred_region
          %s507 = ssub.s32 128, 128
          %508 = vsyncadd %s499, %s507
          %s509 = sadd.s32 %s34, %s36
          %s510 = smul.addr %s35, 3
          %s511 = sadd.s32 %s509, %s510
          %s512 = smul.addr %s511, 128
          %s513 = scalar_lea.hbm %s5, %s512
          %s515 = sshll.u32 %s502, 4
          %s516 = int_to_ptr.vmem [resolvable:$true] %s515
          %518 = dma.vmem_to_hbm [thread:$0]  %s516, 128, %s513, %s499
        $region52: #{tpu_custom_call.1} parent=35 // pred_fallthru
          _
      $region36: #{tpu_custom_call.1} parent=5 // pred_fallthru
        _
      %p519 = scmp.le.s32.totalorder 2, %s23
      // Predicated region
      $region53: #{tpu_custom_call.1} parent=5 // pred_check
        %p520 = pneg %p519
      $region54: #{tpu_custom_call.1} parent=5 // pred_check_branch
        %522 = sbr.rel (%p520) target = $region56
      $region55: #{tpu_custom_call.1} parent=5 // pred_region
        %s523 = ssub.s32 %s23, 2
        // Predicated region
        $region57: #{tpu_custom_call.1} parent=55 // pred_check
          %p524 = pneg %p222
        $region58: #{tpu_custom_call.1} parent=55 // pred_check_branch
          %526 = sbr.rel (%p524) target = $region60
        $region59: #{tpu_custom_call.1} parent=55 // pred_region
          %s527 = sand.u32 %s207, 1
          %s528 = scalar_lea.sflag [#allocation6], %s527
          %s529 = sand.u32 %s207, 1
          %s530 = smul.addr %s529, 8
          %s531 = scalar_lea.vmem [#allocation7], %s530
          %532 = dma.done %s528, 128
        $region60: #{tpu_custom_call.1} parent=55 // pred_fallthru
          _
      $region56: #{tpu_custom_call.1} parent=5 // pred_fallthru
        _
    $region6: #{tpu_custom_call.1} parent=1 // loop_footer
      %s27 = sadd.s32 1, %s23
    $region7: #{tpu_custom_call.1} parent=1 // loop_footer_branch
      %22 = sbr.rel target = $region3
    $region8: #{tpu_custom_call.1} parent=1 // loop_exit
      _
    %533 = vsyncpa [#allocation5], 1
    %s534 = scalar_lea.sflag [#allocation5], 1
    %535 = vsyncpa %s534, 1
    %536 = vsyncpa [#allocation6], 1
    %s537 = scalar_lea.sflag [#allocation6], 1
    %538 = vsyncpa %s537, 1

</llo_original>
